<compile_context>
chip_gen: v7x
topology: tpu7x:2x2x1
jax: 0.10.0
libtpu: 0.0.40
codegen_flags: <defaults>
</compile_context>

<pallas_src>
import functools

import jax
import jax.numpy as jnp
from jax import lax
from jax.experimental import pallas as pl
from jax.experimental.pallas import tpu as pltpu


def mlp_kernel(x_ref, w1_ref, b1_ref, w2_ref, b2_ref, w3_ref, b3_ref, o_ref):
    # fc1 + tanh  (MXU matmul, f32 accumulation; bias/tanh in f32)
    h = jnp.dot(x_ref[...], w1_ref[...], preferred_element_type=jnp.float32)
    h = jnp.tanh(h + b1_ref[...])
    # fc2 + tanh  (cast h to the weight dtype so bf16 weights hit the bf16 MXU path)
    h = jnp.dot(h.astype(w2_ref.dtype), w2_ref[...],
                preferred_element_type=jnp.float32)
    h = jnp.tanh(h + b2_ref[...])                       # (tile_b, hidden) f32
    # fc3: contract the (1, hidden) w3 row against the hidden (lane) dim of h.
    # Result is (1, tile_b) -> lane-dense output store (no masked vst.msk).
    out = lax.dot_general(
        w3_ref[...], h,
        dimension_numbers=(((1,), (1,)), ((), ())),
        preferred_element_type=jnp.float32)
    out = out + b3_ref[0]                               # SMEM scalar bias
    o_ref[...] = out.reshape(o_ref.shape).astype(o_ref.dtype)


def _choose_tile_b(B: int) -> int:
    """Large batch tile (amortize ~0.35us/grid-step), multiple of 8, and keep
    >= 2 grid steps when B > 8 so both v7x TensorCores get work."""
    half = max(B // 2, 8)
    tile = min(half, 1024)
    if tile >= 256:
        tile = (tile // 256) * 256
    else:
        tile = (tile // 8) * 8
    return max(tile, 8)


def neural_net_forward(x, w1, b1, w2, b2, w3, b3, *, tile_b=None, use_bf16=False):
    B, input_dim = x.shape
    hidden_dim = w1.shape[1]

    if tile_b is None:
        tile_b = _choose_tile_b(B)
    assert tile_b % 8 == 0 and tile_b >= 8, "tile_b must be a multiple of 8"

    num_tiles = pl.cdiv(B, tile_b)
    B_pad = num_tiles * tile_b
    if B_pad != B:  # ragged batch: pad with zero rows, sliced off after the call
        x = jnp.pad(x, ((0, B_pad - B), (0, 0)))

    # Kernel-friendly parameter layouts.
    b1 = b1.reshape(1, hidden_dim).astype(jnp.float32)
    b2 = b2.reshape(1, hidden_dim).astype(jnp.float32)
    w3_row = w3.reshape(1, hidden_dim).astype(jnp.float32)   # (hidden,1) -> (1,hidden)
    b3_s = b3.reshape(1).astype(jnp.float32)                 # SMEM scalar

    if use_bf16:  # v6e / v7x: bf16 MXU + halved HBM traffic for the x stream
        x = x.astype(jnp.bfloat16)
        w1 = w1.astype(jnp.bfloat16)
        w2 = w2.astype(jnp.bfloat16)

    in_specs = [
        pl.BlockSpec((tile_b, input_dim), lambda i: (i, 0)),       # x tile
        pl.BlockSpec((input_dim, hidden_dim), lambda i: (0, 0)),   # w1 (resident)
        pl.BlockSpec((1, hidden_dim), lambda i: (0, 0)),           # b1
        pl.BlockSpec((hidden_dim, hidden_dim), lambda i: (0, 0)),  # w2 (resident)
        pl.BlockSpec((1, hidden_dim), lambda i: (0, 0)),           # b2
        pl.BlockSpec((1, hidden_dim), lambda i: (0, 0)),           # w3 row
        pl.BlockSpec(memory_space=pltpu.MemorySpace.SMEM),         # b3 scalar
    ]
    # Lane-dense output: (num_tiles, 1, tile_b); reshaped to (B, 1) below.
    out_spec = pl.BlockSpec((1, 1, tile_b), lambda i: (i, 0, 0))

    flops = 2 * B_pad * (input_dim * hidden_dim + hidden_dim * hidden_dim + hidden_dim)
    transcendentals = 2 * B_pad * hidden_dim
    bytes_in = x.size * x.dtype.itemsize + w1.size * w1.dtype.itemsize \
        + w2.size * w2.dtype.itemsize + 4 * (3 * hidden_dim + 1)
    bytes_accessed = bytes_in + 4 * B_pad  # + f32 output

    out = pl.pallas_call(
        mlp_kernel,
        out_shape=jax.ShapeDtypeStruct((num_tiles, 1, tile_b), jnp.float32),
        grid_spec=pltpu.PrefetchScalarGridSpec(
            num_scalar_prefetch=0,
            grid=(num_tiles,),
            in_specs=in_specs,
            out_specs=out_spec,
        ),
        compiler_params=pltpu.CompilerParams(
            dimension_semantics=("parallel",),
        ),
        cost_estimate=pl.CostEstimate(
            flops=flops,
            transcendentals=transcendentals,
            bytes_accessed=bytes_accessed,
        ),
    )(x, w1, b1, w2, b2, w3_row, b3_s)

    # (num_tiles, 1, tile_b) -> (B, 1), dropping any pad rows.
    return out.reshape(-1)[:B].reshape(B, 1)


def init_params(key, input_dim, hidden_dim):
    """Deterministic Xavier-uniform init, zero bias (matches weights_reset)."""
    def xavier(k, fan_in, fan_out):
        limit = jnp.sqrt(6.0 / (fan_in + fan_out))
        # stored as (in, out): pre-transposed relative to PyTorch's (out, in)
        return jax.random.uniform(k, (fan_in, fan_out), jnp.float32, -limit, limit)

    k1, k2, k3 = jax.random.split(key, 3)
    w1 = xavier(k1, input_dim, hidden_dim)
    b1 = jnp.zeros((1, hidden_dim), jnp.float32)
    w2 = xavier(k2, hidden_dim, hidden_dim)
    b2 = jnp.zeros((1, hidden_dim), jnp.float32)
    w3 = xavier(k3, hidden_dim, 1)
    b3 = jnp.zeros((1, 1), jnp.float32)
    return w1, b1, w2, b2, w3, b3


if __name__ == "__main__":
    key = jax.random.PRNGKey(0)
    k_x, k_p = jax.random.split(key)

    batch = 100          # ragged on purpose: exercises cdiv grid + pad path
    input_dim = 16
    hidden_dim = 32

    x = jax.random.normal(k_x, (batch, input_dim), jnp.float32)
    params = init_params(k_p, input_dim, hidden_dim)

    out = neural_net_forward(x, *params)        # f32 path (use_bf16=True for v6e/v7x)
    out = jax.block_until_ready(out)

    # Pure-JAX reference of the same math.
    w1, b1, w2, b2, w3, b3 = params
    ref = jnp.tanh(x @ w1 + b1)
    ref = jnp.tanh(ref @ w2 + b2)
    ref = ref @ w3 + b3

    assert out.shape == (batch, 1)
    assert jnp.allclose(out, ref, atol=1e-4, rtol=1e-4), "mismatch vs reference"

    print("KERNEL_OK")
</pallas_src>

<mosaic_0001>
module attributes {stable_mosaic.version = 11 : i64} {
  func.func @mlp_kernel(%arg0: i32, %arg1: memref<48x16xf32, #tpu.memory_space<vmem>>, %arg2: memref<16x32xf32, #tpu.memory_space<vmem>>, %arg3: memref<1x32xf32, #tpu.memory_space<vmem>>, %arg4: memref<32x32xf32, #tpu.memory_space<vmem>>, %arg5: memref<1x32xf32, #tpu.memory_space<vmem>>, %arg6: memref<1x32xf32, #tpu.memory_space<vmem>>, %arg7: memref<1xf32, #tpu.memory_space<smem>>, %arg8: memref<1x1x48xf32, #tpu.memory_space<vmem>>) attributes {dimension_semantics = [#tpu.dimension_semantics<parallel>], iteration_bounds = array<i64: 3>, scalar_prefetch = 0 : i64, scratch_operands = 0 : i64, tpu.core_type = #tpu.core_type<tc>, window_params = [{transform_indices = @transform_0, window_bounds = array<i64: 48, 16>}, {pipeline_mode = #tpu.pipeline_mode<synchronous>, transform_indices = @transform_1, window_bounds = array<i64: 16, 32>}, {pipeline_mode = #tpu.pipeline_mode<synchronous>, transform_indices = @transform_2, window_bounds = array<i64: 1, 32>}, {pipeline_mode = #tpu.pipeline_mode<synchronous>, transform_indices = @transform_3, window_bounds = array<i64: 32, 32>}, {pipeline_mode = #tpu.pipeline_mode<synchronous>, transform_indices = @transform_4, window_bounds = array<i64: 1, 32>}, {pipeline_mode = #tpu.pipeline_mode<synchronous>, transform_indices = @transform_5, window_bounds = array<i64: 1, 32>}, {transform_indices = @transform_6, window_bounds = array<i64: 1>}, {transform_indices = @transform_7, window_bounds = array<i64: 1, 1, 48>}]} {
    %c0 = arith.constant 0 : index
    %c0_0 = arith.constant 0 : index
    %0 = vector.load %arg1[%c0, %c0_0] : memref<48x16xf32, #tpu.memory_space<vmem>>, vector<48x16xf32>
    %c0_1 = arith.constant 0 : index
    %c0_2 = arith.constant 0 : index
    %1 = vector.load %arg2[%c0_1, %c0_2] : memref<16x32xf32, #tpu.memory_space<vmem>>, vector<16x32xf32>
    %cst = arith.constant dense<0.000000e+00> : vector<48x32xf32>
    %2 = tpu.matmul %0, %1, %cst {dimension_numbers = #tpu.dot_dimension_numbers<[1], [0], [0], [1], [0, 0, 1, 1], [], []>} : vector<48x16xf32>, vector<16x32xf32>, vector<48x32xf32> -> vector<48x32xf32>
    %c0_3 = arith.constant 0 : index
    %c0_4 = arith.constant 0 : index
    %3 = vector.load %arg3[%c0_3, %c0_4] : memref<1x32xf32, #tpu.memory_space<vmem>>, vector<1x32xf32>
    %4 = vector.broadcast %3 : vector<1x32xf32> to vector<48x32xf32>
    %5 = arith.addf %2, %4 : vector<48x32xf32>
    %6 = math.tanh %5 : vector<48x32xf32>
    %c0_5 = arith.constant 0 : index
    %c0_6 = arith.constant 0 : index
    %7 = vector.load %arg4[%c0_5, %c0_6] : memref<32x32xf32, #tpu.memory_space<vmem>>, vector<32x32xf32>
    %cst_7 = arith.constant dense<0.000000e+00> : vector<48x32xf32>
    %8 = tpu.matmul %6, %7, %cst_7 {dimension_numbers = #tpu.dot_dimension_numbers<[1], [0], [0], [1], [0, 0, 1, 1], [], []>} : vector<48x32xf32>, vector<32x32xf32>, vector<48x32xf32> -> vector<48x32xf32>
    %c0_8 = arith.constant 0 : index
    %c0_9 = arith.constant 0 : index
    %9 = vector.load %arg5[%c0_8, %c0_9] : memref<1x32xf32, #tpu.memory_space<vmem>>, vector<1x32xf32>
    %10 = vector.broadcast %9 : vector<1x32xf32> to vector<48x32xf32>
    %11 = arith.addf %8, %10 : vector<48x32xf32>
    %12 = math.tanh %11 : vector<48x32xf32>
    %c0_10 = arith.constant 0 : index
    %c0_11 = arith.constant 0 : index
    %13 = vector.load %arg6[%c0_10, %c0_11] : memref<1x32xf32, #tpu.memory_space<vmem>>, vector<1x32xf32>
    %cst_12 = arith.constant dense<0.000000e+00> : vector<1x48xf32>
    %14 = tpu.matmul %13, %12, %cst_12 {dimension_numbers = #tpu.dot_dimension_numbers<[1], [1], [0], [0], [0, 0, 1, 0], [], []>} : vector<1x32xf32>, vector<48x32xf32>, vector<1x48xf32> -> vector<1x48xf32>
    %c0_13 = arith.constant 0 : index
    %15 = memref.load %arg7[%c0_13] : memref<1xf32, #tpu.memory_space<smem>>
    %16 = vector.broadcast %15 : f32 to vector<1x48xf32>
    %17 = arith.addf %14, %16 : vector<1x48xf32>
    %18 = vector.shape_cast %17 : vector<1x48xf32> to vector<1x1x48xf32>
    %c0_14 = arith.constant 0 : index
    %c0_15 = arith.constant 0 : index
    %c0_16 = arith.constant 0 : index
    %19 = vector.load %arg8[%c0_14, %c0_15, %c0_16] : memref<1x1x48xf32, #tpu.memory_space<vmem>>, vector<1x1x48xf32>
    tpu.vector_store %arg8[%c0_14, %c0_15, %c0_16], %18 {strides = array<i32>} : memref<1x1x48xf32, #tpu.memory_space<vmem>>, vector<1x1x48xf32>,
    return
  }
  func.func @transform_0(%arg0: i32) -> (i32, i32) {
    %c0_i32 = arith.constant 0 : i32
    %c0_i32_0 = arith.constant 0 : i32
    return %arg0, %c0_i32 : i32, i32
  }
  func.func @transform_1(%arg0: i32) -> (i32, i32) {
    %c0_i32 = arith.constant 0 : i32
    %c0_i32_0 = arith.constant 0 : i32
    %c0_i32_1 = arith.constant 0 : i32
    return %c0_i32, %c0_i32_0 : i32, i32
  }
  func.func @transform_2(%arg0: i32) -> (i32, i32) {
    %c0_i32 = arith.constant 0 : i32
    %c0_i32_0 = arith.constant 0 : i32
    %c0_i32_1 = arith.constant 0 : i32
    return %c0_i32, %c0_i32_0 : i32, i32
  }
  func.func @transform_3(%arg0: i32) -> (i32, i32) {
    %c0_i32 = arith.constant 0 : i32
    %c0_i32_0 = arith.constant 0 : i32
    %c0_i32_1 = arith.constant 0 : i32
    return %c0_i32, %c0_i32_0 : i32, i32
  }
  func.func @transform_4(%arg0: i32) -> (i32, i32) {
    %c0_i32 = arith.constant 0 : i32
    %c0_i32_0 = arith.constant 0 : i32
    %c0_i32_1 = arith.constant 0 : i32
    return %c0_i32, %c0_i32_0 : i32, i32
  }
  func.func @transform_5(%arg0: i32) -> (i32, i32) {
    %c0_i32 = arith.constant 0 : i32
    %c0_i32_0 = arith.constant 0 : i32
    %c0_i32_1 = arith.constant 0 : i32
    return %c0_i32, %c0_i32_0 : i32, i32
  }
  func.func @transform_6(%arg0: i32) -> i32 {
    %c0_i32 = arith.constant 0 : i32
    %c0_i32_0 = arith.constant 0 : i32
    return %c0_i32 : i32
  }
  func.func @transform_7(%arg0: i32) -> (i32, i32, i32) {
    %c0_i32 = arith.constant 0 : i32
    %c0_i32_0 = arith.constant 0 : i32
    %c0_i32_1 = arith.constant 0 : i32
    return %arg0, %c0_i32, %c0_i32_0 : i32, i32, i32
  }
}

</mosaic_0001>

<llo_original>
// kernel: tpu_custom_call.1
$region0: #{tpu_custom_call.1}
  #allocation0 [shape = 'u32[]', space=smem, size = 0x4, offset = 0x4, fixed_abs, tag = 'smem constant byte address 0x4 - core index']
  #allocation1 [shape = 'u32[144,128]{1,0:T(1,128)}', space=vmem, size = 0x12000, scoped, tag = 'internal scratch']
  #allocation2 [shape = 'f32[1]{0:T(128)S(6)}', space=smem, size = 0x200, scoped, tag = 'scoped memory for tpu_custom_call.1']
  %s0 = inlined_call_operand.vmem [shape: f32[144,16], index: 0, kind: input, shape index: {}]
  %s1 = inlined_call_operand.vmem [shape: f32[16,32], index: 1, kind: input, shape index: {}]
  %s2 = inlined_call_operand.vmem [shape: f32[1,32], index: 2, kind: input, shape index: {}]
  %s3 = inlined_call_operand.vmem [shape: f32[32,32], index: 3, kind: input, shape index: {}]
  %s4 = inlined_call_operand.vmem [shape: f32[1,32], index: 4, kind: input, shape index: {}]
  %s5 = inlined_call_operand.vmem [shape: f32[1,32], index: 5, kind: input, shape index: {}]
  %s6 = inlined_call_operand.<no memory space> [shape: f32[1], index: 6, kind: input, shape index: {}]
  %s7 = inlined_call_operand.hbm [shape: f32[3,1,48], index: 7, kind: output, shape index: {}]
  %s8 = sld [smem:[#allocation0]]
  $region61: #{tpu_custom_call.1} parent=0
    _
  %s10 = ssub.s32 1, %s8
  %s11 = scalar_select 0, %s10, %s8
  %12 = sst [smem:[#allocation2]] %s6
  $region1: #{tpu_custom_call.1} parent=0
    #allocation3 [shape = 'u8[1024]{0}', space=vmem, size = 0x400, scoped, tag = 'output window, operand 0']
    #allocation4 [shape = 's32[2]{0}', space=sflag, size = 0x8, scoped, tag = 'scoped memory for tpu_custom_call.1']
    %13 = vsyncpa [#allocation4], 0
    %s14 = scalar_lea.sflag [#allocation4], 1
    %15 = vsyncpa %s14, 0
    loop: start=0, step=1, limit=5
    $region2: #{tpu_custom_call.1} parent=1 // loop_pre_header
      _
    $region3: #{tpu_custom_call.1} parent=1 // loop_header
      %s17 = sphi 0, %s21
      %p18 = scmp.ge.s32.totalorder %s17, 5
      %s27 = sphi 0, %s29
      %s30 = sphi 0, %s27
      %s31 = sphi 0, %s30
      %s47 = sphi 0, %s31
      %s51 = sphi 0, %s51
      %s53 = sphi 0, %s51
      %s54 = sphi 0, %s53
      %s68 = sphi 0, %s54
      %s72 = sphi 0, %s72
      %s74 = sphi 0, %s72
      %s75 = sphi 0, %s74
      %s89 = sphi 0, %s75
      %s93 = sphi 0, %s93
      %s95 = sphi 0, %s93
      %s96 = sphi 0, %s95
      %s110 = sphi 0, %s96
      %s114 = sphi 0, %s114
      %s116 = sphi 0, %s114
      %s117 = sphi 0, %s116
      %s131 = sphi 0, %s117
      %s135 = sphi 0, %s135
      %s137 = sphi 0, %s135
      %s138 = sphi 0, %s137
      %s152 = sphi 0, %s138
      %s156 = sphi 0, %s156
      %s158 = sphi 0, %s156
      %s159 = sphi 0, %s158
      %s173 = sphi 0, %s159
      %s179 = sphi 0, %s181
      %s182 = sphi 0, %s179
      %s183 = sphi 0, %s182
      %s199 = sphi 0, %s183
    $region4: #{tpu_custom_call.1} parent=1 // loop_header_branch
      %20 = sbr.rel (%p18) target = $region8
    $region5: #{tpu_custom_call.1} parent=1 // loop_body
      %s22 = ssub.s32 %s17, 1
      %s23 = ssub.s32 %s17, 2
      %s24 = sadd.s32 %s17, 1
      %s25 = ssub.s32 %s17, %s24
      %p26 = scmp.eq.s32.totalorder %s25, 0
      %s28 = sadd.s32 %s27, 1
      %s29 = scalar_select %p26, %s27, %s28
      %p32 = pneg %p26
      %p33 = scmp.eq.s32.totalorder %s17, 2
      %p34 = por %p32, %p33
      %p35 = scmp.ne.s32.totalorder %s27, %s30
      %p36 = scmp.eq.s32.totalorder %s17, 0
      %p37 = por %p35, %p36
      %p38 = scmp.ne.s32.totalorder %s27, %s30
      %p39 = scmp.eq.s32.totalorder %s22, 2
      %p40 = por %p38, %p39
      %p41 = scmp.ne.s32.totalorder %s30, %s31
      %p42 = scmp.eq.s32.totalorder %s22, 0
      %p43 = por %p41, %p42
      %p44 = scmp.ne.s32.totalorder %s30, %s31
      %p45 = scmp.eq.s32.totalorder %s23, 2
      %p46 = por %p44, %p45
      %p48 = scmp.ne.s32.totalorder %s31, %s47
      %p49 = scmp.eq.s32.totalorder %s23, 0
      %p50 = por %p48, %p49
      %s52 = sadd.s32 %s51, 1
      %p55 = scmp.eq.s32.totalorder %s17, 2
      %p56 = scmp.ne.s32.totalorder %s51, %s53
      %p57 = scmp.eq.s32.totalorder %s17, 0
      %p58 = por %p56, %p57
      %p59 = scmp.ne.s32.totalorder %s51, %s53
      %p60 = scmp.eq.s32.totalorder %s22, 2
      %p61 = por %p59, %p60
      %p62 = scmp.ne.s32.totalorder %s53, %s54
      %p63 = scmp.eq.s32.totalorder %s22, 0
      %p64 = por %p62, %p63
      %p65 = scmp.ne.s32.totalorder %s53, %s54
      %p66 = scmp.eq.s32.totalorder %s23, 2
      %p67 = por %p65, %p66
      %p69 = scmp.ne.s32.totalorder %s54, %s68
      %p70 = scmp.eq.s32.totalorder %s23, 0
      %p71 = por %p69, %p70
      %s73 = sadd.s32 %s72, 1
      %p76 = scmp.eq.s32.totalorder %s17, 2
      %p77 = scmp.ne.s32.totalorder %s72, %s74
      %p78 = scmp.eq.s32.totalorder %s17, 0
      %p79 = por %p77, %p78
      %p80 = scmp.ne.s32.totalorder %s72, %s74
      %p81 = scmp.eq.s32.totalorder %s22, 2
      %p82 = por %p80, %p81
      %p83 = scmp.ne.s32.totalorder %s74, %s75
      %p84 = scmp.eq.s32.totalorder %s22, 0
      %p85 = por %p83, %p84
      %p86 = scmp.ne.s32.totalorder %s74, %s75
      %p87 = scmp.eq.s32.totalorder %s23, 2
      %p88 = por %p86, %p87
      %p90 = scmp.ne.s32.totalorder %s75, %s89
      %p91 = scmp.eq.s32.totalorder %s23, 0
      %p92 = por %p90, %p91
      %s94 = sadd.s32 %s93, 1
      %p97 = scmp.eq.s32.totalorder %s17, 2
      %p98 = scmp.ne.s32.totalorder %s93, %s95
      %p99 = scmp.eq.s32.totalorder %s17, 0
      %p100 = por %p98, %p99
      %p101 = scmp.ne.s32.totalorder %s93, %s95
      %p102 = scmp.eq.s32.totalorder %s22, 2
      %p103 = por %p101, %p102
      %p104 = scmp.ne.s32.totalorder %s95, %s96
      %p105 = scmp.eq.s32.totalorder %s22, 0
      %p106 = por %p104, %p105
      %p107 = scmp.ne.s32.totalorder %s95, %s96
      %p108 = scmp.eq.s32.totalorder %s23, 2
      %p109 = por %p107, %p108
      %p111 = scmp.ne.s32.totalorder %s96, %s110
      %p112 = scmp.eq.s32.totalorder %s23, 0
      %p113 = por %p111, %p112
      %s115 = sadd.s32 %s114, 1
      %p118 = scmp.eq.s32.totalorder %s17, 2
      %p119 = scmp.ne.s32.totalorder %s114, %s116
      %p120 = scmp.eq.s32.totalorder %s17, 0
      %p121 = por %p119, %p120
      %p122 = scmp.ne.s32.totalorder %s114, %s116
      %p123 = scmp.eq.s32.totalorder %s22, 2
      %p124 = por %p122, %p123
      %p125 = scmp.ne.s32.totalorder %s116, %s117
      %p126 = scmp.eq.s32.totalorder %s22, 0
      %p127 = por %p125, %p126
      %p128 = scmp.ne.s32.totalorder %s116, %s117
      %p129 = scmp.eq.s32.totalorder %s23, 2
      %p130 = por %p128, %p129
      %p132 = scmp.ne.s32.totalorder %s117, %s131
      %p133 = scmp.eq.s32.totalorder %s23, 0
      %p134 = por %p132, %p133
      %s136 = sadd.s32 %s135, 1
      %p139 = scmp.eq.s32.totalorder %s17, 2
      %p140 = scmp.ne.s32.totalorder %s135, %s137
      %p141 = scmp.eq.s32.totalorder %s17, 0
      %p142 = por %p140, %p141
      %p143 = scmp.ne.s32.totalorder %s135, %s137
      %p144 = scmp.eq.s32.totalorder %s22, 2
      %p145 = por %p143, %p144
      %p146 = scmp.ne.s32.totalorder %s137, %s138
      %p147 = scmp.eq.s32.totalorder %s22, 0
      %p148 = por %p146, %p147
      %p149 = scmp.ne.s32.totalorder %s137, %s138
      %p150 = scmp.eq.s32.totalorder %s23, 2
      %p151 = por %p149, %p150
      %p153 = scmp.ne.s32.totalorder %s138, %s152
      %p154 = scmp.eq.s32.totalorder %s23, 0
      %p155 = por %p153, %p154
      %s157 = sadd.s32 %s156, 1
      %p160 = scmp.eq.s32.totalorder %s17, 2
      %p161 = scmp.ne.s32.totalorder %s156, %s158
      %p162 = scmp.eq.s32.totalorder %s17, 0
      %p163 = por %p161, %p162
      %p164 = scmp.ne.s32.totalorder %s156, %s158
      %p165 = scmp.eq.s32.totalorder %s22, 2
      %p166 = por %p164, %p165
      %p167 = scmp.ne.s32.totalorder %s158, %s159
      %p168 = scmp.eq.s32.totalorder %s22, 0
      %p169 = por %p167, %p168
      %p170 = scmp.ne.s32.totalorder %s158, %s159
      %p171 = scmp.eq.s32.totalorder %s23, 2
      %p172 = por %p170, %p171
      %p174 = scmp.ne.s32.totalorder %s159, %s173
      %p175 = scmp.eq.s32.totalorder %s23, 0
      %p176 = por %p174, %p175
      %s177 = ssub.s32 %s17, %s24
      %p178 = scmp.eq.s32.totalorder %s177, 0
      %s180 = sadd.s32 %s179, 1
      %s181 = scalar_select %p178, %s179, %s180
      %p184 = pneg %p178
      %p185 = scmp.eq.s32.totalorder %s17, 2
      %p186 = por %p184, %p185
      %p187 = scmp.ne.s32.totalorder %s179, %s182
      %p188 = scmp.eq.s32.totalorder %s17, 0
      %p189 = por %p187, %p188
      %p190 = scmp.ne.s32.totalorder %s179, %s182
      %p191 = scmp.eq.s32.totalorder %s22, 2
      %p192 = por %p190, %p191
      %p193 = scmp.ne.s32.totalorder %s182, %s183
      %p194 = scmp.eq.s32.totalorder %s22, 0
      %p195 = por %p193, %p194
      %p196 = scmp.ne.s32.totalorder %s182, %s183
      %p197 = scmp.eq.s32.totalorder %s23, 2
      %p198 = por %p196, %p197
      %p200 = scmp.ne.s32.totalorder %s183, %s199
      %p201 = scmp.eq.s32.totalorder %s23, 0
      %p202 = por %p200, %p201
      %p203 = scmp.le.s32.totalorder 1, %s17
      %p204 = scmp.lt.s32.totalorder %s17, 4
      %p205 = pnand %p203, %p204
      %p206 = pneg %p205
      // Predicated region
      $region9: #{tpu_custom_call.1} parent=5 // pred_check
        _
      $region10: #{tpu_custom_call.1} parent=5 // pred_check_branch
        %208 = sbr.rel (%p205) target = $region12
      $region11: #{tpu_custom_call.1} parent=5 // pred_region
        %s209 = ssub.s32 %s17, 1
        // Predicated region
        $region13: #{tpu_custom_call.1} parent=11 // pred_check
          %p210 = pneg %p64
        $region14: #{tpu_custom_call.1} parent=11 // pred_check_branch
          %212 = sbr.rel (%p210) target = $region16
        $region15: #{tpu_custom_call.1} parent=11 // pred_region
          _
        $region16: #{tpu_custom_call.1} parent=11 // pred_fallthru
          _
        // Predicated region
        $region17: #{tpu_custom_call.1} parent=11 // pred_check
          %p213 = pneg %p85
        $region18: #{tpu_custom_call.1} parent=11 // pred_check_branch
          %215 = sbr.rel (%p213) target = $region20
        $region19: #{tpu_custom_call.1} parent=11 // pred_region
          _
        $region20: #{tpu_custom_call.1} parent=11 // pred_fallthru
          _
        // Predicated region
        $region21: #{tpu_custom_call.1} parent=11 // pred_check
          %p216 = pneg %p106
        $region22: #{tpu_custom_call.1} parent=11 // pred_check_branch
          %218 = sbr.rel (%p216) target = $region24
        $region23: #{tpu_custom_call.1} parent=11 // pred_region
          _
        $region24: #{tpu_custom_call.1} parent=11 // pred_fallthru
          _
        // Predicated region
        $region25: #{tpu_custom_call.1} parent=11 // pred_check
          %p219 = pneg %p127
        $region26: #{tpu_custom_call.1} parent=11 // pred_check_branch
          %221 = sbr.rel (%p219) target = $region28
        $region27: #{tpu_custom_call.1} parent=11 // pred_region
          _
        $region28: #{tpu_custom_call.1} parent=11 // pred_fallthru
          _
        // Predicated region
        $region29: #{tpu_custom_call.1} parent=11 // pred_check
          %p222 = pneg %p148
        $region30: #{tpu_custom_call.1} parent=11 // pred_check_branch
          %224 = sbr.rel (%p222) target = $region32
        $region31: #{tpu_custom_call.1} parent=11 // pred_region
          _
        $region32: #{tpu_custom_call.1} parent=11 // pred_fallthru
          _
        // Predicated region
        $region33: #{tpu_custom_call.1} parent=11 // pred_check
          %p225 = pneg %p169
        $region34: #{tpu_custom_call.1} parent=11 // pred_check_branch
          %227 = sbr.rel (%p225) target = $region36
        $region35: #{tpu_custom_call.1} parent=11 // pred_region
          _
        $region36: #{tpu_custom_call.1} parent=11 // pred_fallthru
          _
      $region12: #{tpu_custom_call.1} parent=5 // pred_fallthru
        _
      %p228 = scmp.lt.s32.totalorder %s17, 3
      // Predicated region
      $region37: #{tpu_custom_call.1} parent=5 // pred_check
        %p229 = pneg %p228
      $region38: #{tpu_custom_call.1} parent=5 // pred_check_branch
        %231 = sbr.rel (%p229) target = $region40
      $region39: #{tpu_custom_call.1} parent=5 // pred_region
        // Predicated region
        $region41: #{tpu_custom_call.1} parent=39 // pred_check
          %p232 = pneg %p37
        $region42: #{tpu_custom_call.1} parent=39 // pred_check_branch
          %234 = sbr.rel (%p232) target = $region44
        $region43: #{tpu_custom_call.1} parent=39 // pred_region
          %s235 = smul.u32 6, %s17
          %p236 = scmp.lt.s32.totalorder %s235, 17
          %s237 = scalar_select %p236, %s235, 17
          %s238 = smul.addr %s237, 8
          %s239 = scalar_lea.vmem %s0, %s238
          %s240 = smul.u32 6, %s17
        $region44: #{tpu_custom_call.1} parent=39 // pred_fallthru
          _
      $region40: #{tpu_custom_call.1} parent=5 // pred_fallthru
        _
      %p241 = scmp.le.s32.totalorder 1, %s17
      %p242 = scmp.lt.s32.totalorder %s17, 4
      %p243 = pnand %p241, %p242
      %p244 = pneg %p243
      // Predicated region
      $region45: #{tpu_custom_call.1} parent=5 // pred_check
        _
      $region46: #{tpu_custom_call.1} parent=5 // pred_check_branch
        %246 = sbr.rel (%p243) target = $region48
      $region47: #{tpu_custom_call.1} parent=5 // pred_region
        %s247 = ssub.s32 %s17, 1
        %s248 = smul.u32 6, %s22
        %p249 = scmp.lt.s32.totalorder %s248, 17
        %s250 = scalar_select %p249, %s248, 17
        %s251 = smul.addr %s250, 8
        %s252 = scalar_lea.vmem %s0, %s251
        %p253 = pneg %p43
        %p254 = pneg %p40
        %p255 = pneg %p64
        %p256 = pneg %p61
        %p257 = pneg %p85
        %p258 = pneg %p82
        %p259 = pneg %p106
        %p260 = pneg %p103
        %p261 = pneg %p127
        %p262 = pneg %p124
        %p263 = pneg %p148
        %p264 = pneg %p145
        %p265 = pneg %p169
        %p266 = pneg %p166
        %p267 = pneg %p195
        %p268 = pneg %p192
        %s269 = sand.u32 %s182, 1
        %s270 = scalar_lea.sflag [#allocation4], %s269
        %s271 = sand.u32 %s182, 1
        %s272 = scalar_lea.vmem [#allocation3], %s271
        %s273 = smul.u32 6, %s22
        %p274 = scmp.lt.s32.totalorder %s273, 17
        %s275 = scalar_select %p274, %s273, 17
        %s276 = smul.addr %s275, 8
        %s277 = scalar_lea.vmem %s0, %s276
        %s278 = smul.u32 6, %s22
        %v279 = vld [vmem:[%s277] sm:$0xff]
        %v280 = vld [vmem:[%s277 + $0x8] sm:$0xff]
        %v281 = vld [vmem:[%s277 + $0x10] sm:$0xff]
        %v282 = vld [vmem:[%s277 + $0x18] sm:$0xff]
        %v283 = vld [vmem:[%s277 + $0x20] sm:$0xff]
        %v284 = vld [vmem:[%s277 + $0x28] sm:$0xff]
        %v285 = vld [vmem:[%s1] sm:$0xff]
        %v286 = vld [vmem:[%s1 + $0x8] sm:$0xff]
        %v287 = vld [vmem:[%s2] sm:$0x1]
        %v289 = vlaneseq
        %v290 = vshrl.u32 %v289, 7
        %v291 = vsub.s32 0, %v290
        %v292 = vrot.slane %v287, %v291
        %vm294 = vcmask 130048
        %v296 = vsel %vm294, %v279, 0
        %v299 = vsel %vm294, %v280, 0
        %v302 = vsel %vm294, %v281, 0
        %v305 = vsel %vm294, %v282, 0
        %v308 = vsel %vm294, %v283, 0
        %v311 = vsel %vm294, %v284, 0
        %313 = vmatprep.subr.mxu0 0.0
        %314 = vmatpush1.msra.mxu0 %v285
        %315 = vmatprep.subr.mxu0 0.0
        %316 = vmatpush1.msra.mxu0 %v286
        %317 = vmatprep.subr.mxu0 0.0
        %318 = vmatpush1.msra.mxu0 0.0
        %319 = vmatprep.subr.mxu0 0.0
        %320 = vmatpush1.msra.mxu0 0.0
        %321 = vmatprep.subr.mxu0 0.0
        %322 = vmatpush1.msra.mxu0 0.0
        %323 = vmatprep.subr.mxu0 0.0
        %324 = vmatpush1.msra.mxu0 0.0
        %325 = vmatprep.subr.mxu0 0.0
        %326 = vmatpush1.msra.mxu0 0.0
        %327 = vmatprep.subr.mxu0 0.0
        %328 = vmatpush1.msra.mxu0 0.0
        %329 = vmatprep.subr.mxu0 0.0
        %330 = vmatpush1.msra.mxu0 0.0
        %331 = vmatprep.subr.mxu0 0.0
        %332 = vmatpush1.msra.mxu0 0.0
        %333 = vmatprep.subr.mxu0 0.0
        %334 = vmatpush1.msra.mxu0 0.0
        %335 = vmatprep.subr.mxu0 0.0
        %336 = vmatpush1.msra.mxu0 0.0
        %337 = vmatprep.subr.mxu0 0.0
        %338 = vmatpush1.msra.mxu0 0.0
        %339 = vmatprep.subr.mxu0 0.0
        %340 = vmatpush1.msra.mxu0 0.0
        %341 = vmatprep.subr.mxu0 0.0
        %342 = vmatpush1.msra.mxu0 0.0
        %343 = vmatprep.subr.mxu0 0.0
        %344 = vmatpush1.msra.mxu0 0.0
        %345 = vmatprep.subr.mxu0 0.0
        %346 = vmatpush1.msra.mxu0 0.0
        %347 = vmatprep.subr.mxu0 0.0
        %348 = vmatpush1.msra.mxu0 0.0
        %349 = vmatprep.subr.mxu0 0.0
        %350 = vmatpush1.msra.mxu0 0.0
        %351 = vmatprep.subr.mxu0 0.0
        %352 = vmatpush1.msra.mxu0 0.0
        %353 = vmatprep.subr.mxu0 0.0
        %354 = vmatpush1.msra.mxu0 0.0
        %355 = vmatprep.subr.mxu0 0.0
        %356 = vmatpush1.msra.mxu0 0.0
        %357 = vmatprep.subr.mxu0 0.0
        %358 = vmatpush1.msra.mxu0 0.0
        %359 = vmatprep.subr.mxu0 0.0
        %360 = vmatpush1.msra.mxu0 0.0
        %361 = vmatprep.subr.mxu0 0.0
        %362 = vmatpush1.msra.mxu0 0.0
        %363 = vmatprep.subr.mxu0 0.0
        %364 = vmatpush1.msra.mxu0 0.0
        %365 = vmatprep.subr.mxu0 0.0
        %366 = vmatpush1.msra.mxu0 0.0
        %367 = vmatprep.subr.mxu0 0.0
        %368 = vmatpush1.msra.mxu0 0.0
        %369 = vmatprep.subr.mxu0 0.0
        %370 = vmatpush1.msra.mxu0 0.0
        %371 = vmatprep.subr.mxu0 0.0
        %372 = vmatpush1.msra.mxu0 0.0
        %373 = vmatprep.subr.mxu0 0.0
        %374 = vmatpush1.msra.mxu0 0.0
        %375 = vmatprep.subr.mxu0 0.0
        %376 = vmatpush1.msra.mxu0 0.0
        %377 = vmatprep.mubr.f32.mxu0 0.0
        %378 = vmatmul.mubr.f32.gmra.mrb[0].mxu0 %v296
        %v379 = vpop.f32.mrb[0].mxu0
        %v380 = vadd.f32 %v292, %v379
        %v381 = vpop.f32.mrb[0].mxu0
        %382 = vmatprep.mubr.f32.mxu0 0.0
        %383 = vmatmul.mubr.f32.gmra.mrb[0].mxu0 %v299
        %v384 = vpop.f32.mrb[0].mxu0
        %v385 = vadd.f32 %v292, %v384
        %v386 = vpop.f32.mrb[0].mxu0
        %387 = vmatprep.mubr.f32.mxu0 0.0
        %388 = vmatmul.mubr.f32.gmra.mrb[0].mxu0 %v302
        %v389 = vpop.f32.mrb[0].mxu0
        %v390 = vadd.f32 %v292, %v389
        %v391 = vpop.f32.mrb[0].mxu0
        %392 = vmatprep.mubr.f32.mxu0 0.0
        %393 = vmatmul.mubr.f32.gmra.mrb[0].mxu0 %v305
        %v394 = vpop.f32.mrb[0].mxu0
        %v395 = vadd.f32 %v292, %v394
        %v396 = vpop.f32.mrb[0].mxu0
        %397 = vmatprep.mubr.f32.mxu0 0.0
        %398 = vmatmul.mubr.f32.gmra.mrb[0].mxu0 %v308
        %v399 = vpop.f32.mrb[0].mxu0
        %v400 = vadd.f32 %v292, %v399
        %v401 = vpop.f32.mrb[0].mxu0
        %402 = vmatprep.mubr.f32.mxu0 0.0
        %403 = vmatmul.mubr.f32.gmra.mrb[0].mxu0 %v311
        %v404 = vpop.f32.mrb[0].mxu0
        %v405 = vadd.f32 %v292, %v404
        %v406 = vpop.f32.mrb[0].mxu0
        %407 = vdwg.mxu0
        %v408 = vtanh.pop %v380
        %v409 = vtanh.pop %v385
        %v410 = vtanh.pop %v390
        %v411 = vtanh.pop %v395
        %v412 = vtanh.pop %v400
        %v413 = vtanh.pop %v405
        %v414 = vld [vmem:[%s3] sm:$0xff]
        %v415 = vld [vmem:[%s3 + $0x8] sm:$0xff]
        %v416 = vld [vmem:[%s3 + $0x10] sm:$0xff]
        %v417 = vld [vmem:[%s3 + $0x18] sm:$0xff]
        %v418 = vld [vmem:[%s4] sm:$0x1]
        %v420 = vlaneseq
        %v421 = vshrl.u32 %v420, 7
        %v422 = vsub.s32 0, %v421
        %v423 = vrot.slane %v418, %v422
        %vm425 = vcmask 261120
        %v427 = vsel %vm425, %v408, 0
        %v430 = vsel %vm425, %v409, 0
        %v433 = vsel %vm425, %v410, 0
        %v436 = vsel %vm425, %v411, 0
        %v439 = vsel %vm425, %v412, 0
        %v442 = vsel %vm425, %v413, 0
        %444 = vmatprep.subr.mxu0 0.0
        %445 = vmatpush1.msra.mxu0 %v414
        %446 = vmatprep.subr.mxu0 0.0
        %447 = vmatpush1.msra.mxu0 %v415
        %448 = vmatprep.subr.mxu0 0.0
        %449 = vmatpush1.msra.mxu0 %v416
        %450 = vmatprep.subr.mxu0 0.0
        %451 = vmatpush1.msra.mxu0 %v417
        %452 = vmatprep.subr.mxu0 0.0
        %453 = vmatpush1.msra.mxu0 0.0
        %454 = vmatprep.subr.mxu0 0.0
        %455 = vmatpush1.msra.mxu0 0.0
        %456 = vmatprep.subr.mxu0 0.0
        %457 = vmatpush1.msra.mxu0 0.0
        %458 = vmatprep.subr.mxu0 0.0
        %459 = vmatpush1.msra.mxu0 0.0
        %460 = vmatprep.subr.mxu0 0.0
        %461 = vmatpush1.msra.mxu0 0.0
        %462 = vmatprep.subr.mxu0 0.0
        %463 = vmatpush1.msra.mxu0 0.0
        %464 = vmatprep.subr.mxu0 0.0
        %465 = vmatpush1.msra.mxu0 0.0
        %466 = vmatprep.subr.mxu0 0.0
        %467 = vmatpush1.msra.mxu0 0.0
        %468 = vmatprep.subr.mxu0 0.0
        %469 = vmatpush1.msra.mxu0 0.0
        %470 = vmatprep.subr.mxu0 0.0
        %471 = vmatpush1.msra.mxu0 0.0
        %472 = vmatprep.subr.mxu0 0.0
        %473 = vmatpush1.msra.mxu0 0.0
        %474 = vmatprep.subr.mxu0 0.0
        %475 = vmatpush1.msra.mxu0 0.0
        %476 = vmatprep.subr.mxu0 0.0
        %477 = vmatpush1.msra.mxu0 0.0
        %478 = vmatprep.subr.mxu0 0.0
        %479 = vmatpush1.msra.mxu0 0.0
        %480 = vmatprep.subr.mxu0 0.0
        %481 = vmatpush1.msra.mxu0 0.0
        %482 = vmatprep.subr.mxu0 0.0
        %483 = vmatpush1.msra.mxu0 0.0
        %484 = vmatprep.subr.mxu0 0.0
        %485 = vmatpush1.msra.mxu0 0.0
        %486 = vmatprep.subr.mxu0 0.0
        %487 = vmatpush1.msra.mxu0 0.0
        %488 = vmatprep.subr.mxu0 0.0
        %489 = vmatpush1.msra.mxu0 0.0
        %490 = vmatprep.subr.mxu0 0.0
        %491 = vmatpush1.msra.mxu0 0.0
        %492 = vmatprep.subr.mxu0 0.0
        %493 = vmatpush1.msra.mxu0 0.0
        %494 = vmatprep.subr.mxu0 0.0
        %495 = vmatpush1.msra.mxu0 0.0
        %496 = vmatprep.subr.mxu0 0.0
        %497 = vmatpush1.msra.mxu0 0.0
        %498 = vmatprep.subr.mxu0 0.0
        %499 = vmatpush1.msra.mxu0 0.0
        %500 = vmatprep.subr.mxu0 0.0
        %501 = vmatpush1.msra.mxu0 0.0
        %502 = vmatprep.subr.mxu0 0.0
        %503 = vmatpush1.msra.mxu0 0.0
        %504 = vmatprep.subr.mxu0 0.0
        %505 = vmatpush1.msra.mxu0 0.0
        %506 = vmatprep.subr.mxu0 0.0
        %507 = vmatpush1.msra.mxu0 0.0
        %508 = vmatprep.mubr.f32.mxu0 0.0
        %509 = vmatmul.mubr.f32.gmra.mrb[0].mxu0 %v427
        %v510 = vpop.f32.mrb[0].mxu0
        %v511 = vadd.f32 %v423, %v510
        %v512 = vpop.f32.mrb[0].mxu0
        %513 = vmatprep.mubr.f32.mxu0 0.0
        %514 = vmatmul.mubr.f32.gmra.mrb[0].mxu0 %v430
        %v515 = vpop.f32.mrb[0].mxu0
        %v516 = vadd.f32 %v423, %v515
        %v517 = vpop.f32.mrb[0].mxu0
        %518 = vmatprep.mubr.f32.mxu0 0.0
        %519 = vmatmul.mubr.f32.gmra.mrb[0].mxu0 %v433
        %v520 = vpop.f32.mrb[0].mxu0
        %v521 = vadd.f32 %v423, %v520
        %v522 = vpop.f32.mrb[0].mxu0
        %523 = vmatprep.mubr.f32.mxu0 0.0
        %524 = vmatmul.mubr.f32.gmra.mrb[0].mxu0 %v436
        %v525 = vpop.f32.mrb[0].mxu0
        %v526 = vadd.f32 %v423, %v525
        %v527 = vpop.f32.mrb[0].mxu0
        %528 = vmatprep.mubr.f32.mxu0 0.0
        %529 = vmatmul.mubr.f32.gmra.mrb[0].mxu0 %v439
        %v530 = vpop.f32.mrb[0].mxu0
        %v531 = vadd.f32 %v423, %v530
        %v532 = vpop.f32.mrb[0].mxu0
        %533 = vmatprep.mubr.f32.mxu0 0.0
        %534 = vmatmul.mubr.f32.gmra.mrb[0].mxu0 %v442
        %v535 = vpop.f32.mrb[0].mxu0
        %v536 = vadd.f32 %v423, %v535
        %v537 = vpop.f32.mrb[0].mxu0
        %538 = vdwg.mxu0
        %v539 = vtanh.pop %v511
        %v540 = vtanh.pop %v516
        %v541 = vtanh.pop %v521
        %v542 = vtanh.pop %v526
        %v543 = vtanh.pop %v531
        %v544 = vtanh.pop %v536
        %v545 = vld [vmem:[%s5] sm:$0x1]
        %s546 = sld [smem:[#allocation2]]
        %v547 = vstv %s546
        %v549 = vsel %vm425, %v545, 0
        %v552 = vsel %vm425, %v539, 0
        %v555 = vsel %vm425, %v540, 0
        %v558 = vsel %vm425, %v541, 0
        %v561 = vsel %vm425, %v542, 0
        %v564 = vsel %vm425, %v543, 0
        %v567 = vsel %vm425, %v544, 0
        %569 = vmatprep.subr.mxu0 0.0
        %570 = vmatpush1.xpose.msra.mxu0 %v552
        %571 = vmatprep.subr.mxu0 0.0
        %572 = vmatpush1.xpose.msra.mxu0 %v555
        %573 = vmatprep.subr.mxu0 0.0
        %574 = vmatpush1.xpose.msra.mxu0 %v558
        %575 = vmatprep.subr.mxu0 0.0
        %576 = vmatpush1.xpose.msra.mxu0 %v561
        %577 = vmatprep.subr.mxu0 0.0
        %578 = vmatpush1.xpose.msra.mxu0 %v564
        %579 = vmatprep.subr.mxu0 0.0
        %580 = vmatpush1.xpose.msra.mxu0 %v567
        %581 = vmatprep.subr.mxu0 0.0
        %582 = vmatpush1.xpose.msra.mxu0 0.0
        %583 = vmatprep.subr.mxu0 0.0
        %584 = vmatpush1.xpose.msra.mxu0 0.0
        %585 = vmatprep.subr.mxu0 0.0
        %586 = vmatpush1.xpose.msra.mxu0 0.0
        %587 = vmatprep.subr.mxu0 0.0
        %588 = vmatpush1.xpose.msra.mxu0 0.0
        %589 = vmatprep.subr.mxu0 0.0
        %590 = vmatpush1.xpose.msra.mxu0 0.0
        %591 = vmatprep.subr.mxu0 0.0
        %592 = vmatpush1.xpose.msra.mxu0 0.0
        %593 = vmatprep.subr.mxu0 0.0
        %594 = vmatpush1.xpose.msra.mxu0 0.0
        %595 = vmatprep.subr.mxu0 0.0
        %596 = vmatpush1.xpose.msra.mxu0 0.0
        %597 = vmatprep.subr.mxu0 0.0
        %598 = vmatpush1.xpose.msra.mxu0 0.0
        %599 = vmatprep.subr.mxu0 0.0
        %600 = vmatpush1.xpose.msra.mxu0 0.0
        %601 = vmatprep.subr.mxu0 0.0
        %602 = vmatpush1.xpose.msra.mxu0 0.0
        %603 = vmatprep.subr.mxu0 0.0
        %604 = vmatpush1.xpose.msra.mxu0 0.0
        %605 = vmatprep.subr.mxu0 0.0
        %606 = vmatpush1.xpose.msra.mxu0 0.0
        %607 = vmatprep.subr.mxu0 0.0
        %608 = vmatpush1.xpose.msra.mxu0 0.0
        %609 = vmatprep.subr.mxu0 0.0
        %610 = vmatpush1.xpose.msra.mxu0 0.0
        %611 = vmatprep.subr.mxu0 0.0
        %612 = vmatpush1.xpose.msra.mxu0 0.0
        %613 = vmatprep.subr.mxu0 0.0
        %614 = vmatpush1.xpose.msra.mxu0 0.0
        %615 = vmatprep.subr.mxu0 0.0
        %616 = vmatpush1.xpose.msra.mxu0 0.0
        %617 = vmatprep.subr.mxu0 0.0
        %618 = vmatpush1.xpose.msra.mxu0 0.0
        %619 = vmatprep.subr.mxu0 0.0
        %620 = vmatpush1.xpose.msra.mxu0 0.0
        %621 = vmatprep.subr.mxu0 0.0
        %622 = vmatpush1.xpose.msra.mxu0 0.0
        %623 = vmatprep.subr.mxu0 0.0
        %624 = vmatpush1.xpose.msra.mxu0 0.0
        %625 = vmatprep.subr.mxu0 0.0
        %626 = vmatpush1.xpose.msra.mxu0 0.0
        %627 = vmatprep.subr.mxu0 0.0
        %628 = vmatpush1.xpose.msra.mxu0 0.0
        %629 = vmatprep.subr.mxu0 0.0
        %630 = vmatpush1.xpose.msra.mxu0 0.0
        %631 = vmatprep.subr.mxu0 0.0
        %632 = vmatpush1.xpose.msra.mxu0 0.0
        %633 = vmatprep.mubr.f32.mxu0 0.0
        %634 = vmatmul.mubr.f32.gmra.mrb[0].mxu0 %v549
        %v635 = vpop.f32.mrb[0].mxu0
        %v636 = vadd.f32 %v547, %v635
        %v637 = vpop.f32.mrb[0].mxu0
        %638 = vdwg.mxu0
        %vm639 = vcmask 385024
        %640 = vst.msk [vmem:[%s272] sm:$0x1] %vm639, %v636
        %s641 = sand.u32 %s182, 1
        %s642 = scalar_lea.sflag [#allocation4], %s641
        %s643 = sand.u32 %s182, 1
        %s644 = scalar_lea.vmem [#allocation3], %s643
        // Predicated region
        $region49: #{tpu_custom_call.1} parent=47 // pred_check
          %p645 = pneg %p192
        $region50: #{tpu_custom_call.1} parent=47 // pred_check_branch
          %647 = sbr.rel (%p645) target = $region52
        $region51: #{tpu_custom_call.1} parent=47 // pred_region
          %s649 = ssub.s32 16, 16
          %650 = vsyncadd %s642, %s649
          %s651 = smul.addr %s22, 16
          %s652 = scalar_lea.hbm %s7, %s651
          %s654 = sshll.u32 %s644, 4
          %s655 = int_to_ptr.vmem [resolvable:$true] %s654
          %657 = dma.vmem_to_hbm [thread:$0]  %s655, 16, %s652, %s642
        $region52: #{tpu_custom_call.1} parent=47 // pred_fallthru
          _
      $region48: #{tpu_custom_call.1} parent=5 // pred_fallthru
        _
      %p658 = scmp.le.s32.totalorder 2, %s17
      // Predicated region
      $region53: #{tpu_custom_call.1} parent=5 // pred_check
        %p659 = pneg %p658
      $region54: #{tpu_custom_call.1} parent=5 // pred_check_branch
        %661 = sbr.rel (%p659) target = $region56
      $region55: #{tpu_custom_call.1} parent=5 // pred_region
        %s662 = ssub.s32 %s17, 2
        // Predicated region
        $region57: #{tpu_custom_call.1} parent=55 // pred_check
          %p663 = pneg %p198
        $region58: #{tpu_custom_call.1} parent=55 // pred_check_branch
          %665 = sbr.rel (%p663) target = $region60
        $region59: #{tpu_custom_call.1} parent=55 // pred_region
          %s666 = sand.u32 %s183, 1
          %s667 = scalar_lea.sflag [#allocation4], %s666
          %s668 = sand.u32 %s183, 1
          %s669 = scalar_lea.vmem [#allocation3], %s668
          %670 = dma.done %s667, 16
        $region60: #{tpu_custom_call.1} parent=55 // pred_fallthru
          _
      $region56: #{tpu_custom_call.1} parent=5 // pred_fallthru
        _
    $region6: #{tpu_custom_call.1} parent=1 // loop_footer
      %s21 = sadd.s32 1, %s17
    $region7: #{tpu_custom_call.1} parent=1 // loop_footer_branch
      %16 = sbr.rel target = $region3
    $region8: #{tpu_custom_call.1} parent=1 // loop_exit
      _
    %671 = vsyncpa [#allocation4], 1
    %s672 = scalar_lea.sflag [#allocation4], 1
    %673 = vsyncpa %s672, 1

</llo_original>
